<compile_context>
chip_gen: v7x
topology: tpu7x:2x2x1
jax: 0.10.0
libtpu: 0.0.40
codegen_flags: <defaults>
</compile_context>

<pallas_src>
import functools

import jax
import jax.numpy as jnp
from jax import lax
from jax.experimental import pallas as pl
from jax.experimental.pallas import tpu as pltpu


def _round_up(x, m):
    return ((x + m - 1) // m) * m


# --------------------------------------------------------------------------- #
# Kernel
# --------------------------------------------------------------------------- #
def _entity_negation_kernel(feat_ref, logic_ref, w1_ref, b1_ref, w2_ref, b2_ref,
                            feat_out_ref, logic_out_ref, *, dim, dim_p, fuse_k):
    """One batch row-block of:
         feat_out  = W2 @ relu(W1 @ [feature; logic] + b1) + b2
         logic_out = 1 - logic   (padding columns forced to 0)
    """
    feat = feat_ref[...]
    logic = logic_ref[...]

    # Linear1 on the (implicit) concat [feature, logic]; the concat never hits
    # HBM.  For dim_p == 128 we form it in VMEM so the 256-deep MXUs (v6e/v7x)
    # see a single K = 2*dim_p matmul instead of two K = 128 ones.  Operands
    # stay in their storage dtype (bf16 feeds the MXU at full rate); the
    # accumulator is f32 via preferred_element_type.
    if fuse_k:
        cat = jnp.concatenate([feat, logic], axis=-1)          # (bb, 2*dim_p)
        h = jnp.dot(cat, w1_ref[...], preferred_element_type=jnp.float32)
    else:
        h = (jnp.dot(feat, w1_ref[pl.ds(0, dim_p), :],
                     preferred_element_type=jnp.float32)
             + jnp.dot(logic, w1_ref[pl.ds(dim_p, dim_p), :],
                       preferred_element_type=jnp.float32))
    h = jnp.maximum(h + b1_ref[...], 0.0)                      # bias + ReLU in f32

    # Linear2 -- cast h back to the weight dtype so bf16 weights keep the MXU
    # at full rate (no-op for f32 weights).
    w2 = w2_ref[...]
    out = jnp.dot(h.astype(w2.dtype), w2,
                  preferred_element_type=jnp.float32) + b2_ref[...]
    feat_out_ref[...] = out.astype(feat_out_ref.dtype)

    logic_neg = 1.0 - logic.astype(jnp.float32)
    if dim != dim_p:
        # Padding columns of `logic` are 0, so (1 - logic) would write 1s
        # there.  Zero them so the padded output layout stays valid.
        col = lax.broadcasted_iota(jnp.int32, logic_neg.shape, 1)
        logic_neg = jnp.where(col < dim, logic_neg, 0.0)
    logic_out_ref[...] = logic_neg.astype(logic_out_ref.dtype)


# --------------------------------------------------------------------------- #
# One-time weight prep (hoisted out of the per-call hot path)
# --------------------------------------------------------------------------- #
def prepare_entity_negation_params(w1, b1, w2, b2, *, dtype=None):
    """w1: (dim, 2*dim), b1: (dim,), w2: (dim, dim), b2: (dim,)  (PyTorch layout).

    Returns (w1s, b1r, w2t, b2r):
      w1s: (2*dim_p, dim_p) -- transposed W1 with the feature half in rows
           [0, dim) and the logic half in rows [dim_p, dim_p+dim), zero padded.
      w2t: (dim_p, dim_p) transposed W2, zero padded.
      b1r, b2r: (1, dim_p) f32 biases, zero padded.
    dim_p = round_up(dim, 128).  Zero padding keeps the math exact.
    Pass dtype=jnp.bfloat16 for the recommended low-HBM-traffic deployment.
    """
    dim = w2.shape[0]
    assert w1.shape == (dim, 2 * dim) and w2.shape == (dim, dim)
    assert b1.shape == (dim,) and b2.shape == (dim,)
    dtype = w1.dtype if dtype is None else dtype
    dim_p = _round_up(dim, 128)

    w1a = jnp.transpose(w1[:, :dim]).astype(dtype)   # acts on `feature`
    w1b = jnp.transpose(w1[:, dim:]).astype(dtype)   # acts on `logic`
    w1s = (jnp.zeros((2 * dim_p, dim_p), dtype)
           .at[:dim, :dim].set(w1a)
           .at[dim_p:dim_p + dim, :dim].set(w1b))
    w2t = jnp.zeros((dim_p, dim_p), dtype).at[:dim, :dim].set(
        jnp.transpose(w2).astype(dtype))

    def pad_b(b):
        return jnp.zeros((1, dim_p), jnp.float32).at[0, :dim].set(
            b.astype(jnp.float32))

    return w1s, pad_b(b1), w2t, pad_b(b2)


# --------------------------------------------------------------------------- #
# Hardware-aware helpers (trace-time only)
# --------------------------------------------------------------------------- #
def _device_kind():
    try:
        return jax.devices()[0].device_kind.lower()
    except Exception:
        return ""


def _num_tensorcores():
    kind = _device_kind()
    return 2 if any(t in kind for t in ("v7", "7x", "v4", "v5p")) else 1


def _vmem_cap_bytes():
    try:
        return int(pltpu.get_tpu_info().vmem_capacity_bytes)
    except Exception:
        return 64 << 20          # conservative: v7x has 64 MiB per TensorCore


def _pick_block_b(batch, block_b, num_cores):
    bb = max(8, _round_up(min(block_b, batch), 8))
    if num_cores > 1:
        # Multi-TensorCore chips (v7x): aim for >= 2 grid steps per core so the
        # "parallel" batch axis shards across cores AND row-block DMAs hide
        # behind compute.  Single-TC chips keep one big block (less per-step
        # overhead).
        target = 2 * num_cores
        if pl.cdiv(batch, bb) < target and batch >= 8 * target:
            bb = max(8, _round_up(pl.cdiv(batch, target), 8))
    return bb


# --------------------------------------------------------------------------- #
# Entry points
# --------------------------------------------------------------------------- #
@functools.partial(jax.jit, static_argnames=("dim", "block_b"))
def entity_negation_padded(feature_p, logic_p, params, *, dim=None, block_b=1024):
    """Hot-path entry point: feature_p / logic_p already live in the padded
    (B, dim_p) layout (pad once at load time); outputs stay padded too, so no
    per-call jnp.pad / slice HBM passes.  `dim` is the true feature width."""
    w1s, b1r, w2t, b2r = params
    dim_p = w2t.shape[0]
    B, dp = feature_p.shape
    assert logic_p.shape == (B, dp) and dp == dim_p
    dim = dim_p if dim is None else dim

    # bf16 storage halves HBM traffic and keeps the MXU at full rate on
    # v6e/v7x; accumulation stays f32 inside the kernel.
    w_dtype = w1s.dtype
    if jnp.dtype(w_dtype).itemsize < jnp.dtype(feature_p.dtype).itemsize:
        feature_p = feature_p.astype(w_dtype)
        logic_p = logic_p.astype(w_dtype)
    io_dtype = feature_p.dtype
    io_itemsize = jnp.dtype(io_dtype).itemsize
    w_itemsize = jnp.dtype(w_dtype).itemsize

    fuse_k = dim_p < 256     # one K=2*dim_p matmul fills the 256-deep MXU
    num_cores = _num_tensorcores()
    bb = _pick_block_b(B, block_b, num_cores)

    # Constant-index blocks never change across the grid -> single-buffer them
    # (default pipelining would burn 2x VMEM on resident weights).
    def _const_spec(shape, nbuf):
        if nbuf == 1:
            return pl.BlockSpec(shape, lambda i: (0, 0),
                                pipeline_mode=pl.Buffered(1))
        return pl.BlockSpec(shape, lambda i: (0, 0))

    try:
        w1_spec = _const_spec((2 * dim_p, dim_p), 1)
        w2_spec = _const_spec((dim_p, dim_p), 1)
        b_spec = _const_spec((1, dim_p), 1)
        w_bufs = 1
    except Exception:      # older jax without pipeline_mode / pl.Buffered
        w1_spec = _const_spec((2 * dim_p, dim_p), 2)
        w2_spec = _const_spec((dim_p, dim_p), 2)
        b_spec = _const_spec((1, dim_p), 2)
        w_bufs = 2

    # VMEM accounting: row blocks (double-buffered), resident weights, the
    # in-kernel f32 intermediates (h, out, logic_neg) plus concat/upcast
    # copies, and headroom.  Clamp to the chip's physical VMEM (64 MiB on
    # v7x) and shrink bb until the estimate fits.
    vmem_cap = _vmem_cap_bytes()

    def estimate(bb_):
        row = bb_ * dim_p
        io_blocks = 2 * (2 + 2) * row * io_itemsize          # 2 in + 2 out, x2 bufs
        weights = w_bufs * (3 * dim_p * dim_p * w_itemsize + 2 * dim_p * 4)
        scratch = 3 * row * 4 + row * w_itemsize \
            + (2 * row * io_itemsize if fuse_k else 0)
        return int(io_blocks + weights + scratch) + (4 << 20)

    budget = vmem_cap - (8 << 20)
    while bb > 8 and estimate(bb) > budget:
        bb = max(8, _round_up(bb // 2, 8))
    vmem_limit = int(min(vmem_cap, max(32 << 20, estimate(bb) + (8 << 20))))

    grid = (pl.cdiv(B, bb),)
    row_spec = pl.BlockSpec((bb, dim_p), lambda i: (i, 0))

    cost = pl.CostEstimate(
        flops=int(6 * B * dim_p * dim_p),
        transcendentals=0,
        bytes_accessed=int(4 * B * dim_p * io_itemsize
                           + 3 * dim_p * dim_p * w_itemsize + 2 * dim_p * 4))

    kernel = functools.partial(_entity_negation_kernel,
                               dim=dim, dim_p=dim_p, fuse_k=fuse_k)

    feat_out, logic_out = pl.pallas_call(
        kernel,
        out_shape=(jax.ShapeDtypeStruct((B, dim_p), io_dtype),
                   jax.ShapeDtypeStruct((B, dim_p), io_dtype)),
        grid_spec=pltpu.PrefetchScalarGridSpec(
            num_scalar_prefetch=0,
            grid=grid,
            in_specs=[row_spec, row_spec, w1_spec, b_spec, w2_spec, b_spec],
            out_specs=[row_spec, row_spec],
        ),
        compiler_params=pltpu.CompilerParams(
            dimension_semantics=("parallel",),
            vmem_limit_bytes=vmem_limit),
        cost_estimate=cost,
    )(feature_p, logic_p, w1s, b1r, w2t, b2r)
    return feat_out, logic_out


def entity_negation(feature, logic, params, *, block_b=1024):
    """Convenience wrapper taking the module's natural (…, dim) layout.

    NOTE: when dim % 128 != 0 this pads inputs and slices outputs (an extra
    HBM pass each way).  For the hot path, persist activations in the padded
    (B, dim_p) layout and call entity_negation_padded directly."""
    dim = feature.shape[-1]
    assert logic.shape == feature.shape
    dim_p = params[2].shape[0]

    lead = feature.shape[:-1]
    f2 = feature.reshape(-1, dim)
    l2 = logic.reshape(-1, dim)
    if dim_p != dim:
        pad = ((0, 0), (0, dim_p - dim))
        f2 = jnp.pad(f2, pad)
        l2 = jnp.pad(l2, pad)
    f_out, l_out = entity_negation_padded(f2, l2, params, dim=dim,
                                          block_b=block_b)
    if dim_p != dim:
        f_out = f_out[:, :dim]
        l_out = l_out[:, :dim]
    return f_out.reshape(*lead, dim), l_out.reshape(*lead, dim)


# --------------------------------------------------------------------------- #
# Reference / init (for the self-test)
# --------------------------------------------------------------------------- #
def _init_params(key, dim, dtype=jnp.float32):
    """Deterministic init mirroring the PyTorch module's __init__ shapes."""
    k1, k2, k3, k4 = jax.random.split(key, 4)
    bound1 = (6.0 / (2 * dim + dim)) ** 0.5
    bound2 = (6.0 / (dim + dim)) ** 0.5
    w1 = jax.random.uniform(k1, (dim, 2 * dim), dtype, -bound1, bound1)
    w2 = jax.random.uniform(k2, (dim, dim), dtype, -bound2, bound2)
    bb1 = 1.0 / (2 * dim) ** 0.5
    bb2 = 1.0 / dim ** 0.5
    b1 = jax.random.uniform(k3, (dim,), dtype, -bb1, bb1)
    b2 = jax.random.uniform(k4, (dim,), dtype, -bb2, bb2)
    return w1, b1, w2, b2


def _reference(feature, logic, w1, b1, w2, b2):
    logits = jnp.concatenate([feature, logic], axis=-1)
    h = jax.nn.relu(logits @ w1.T + b1)
    return h @ w2.T + b2, 1.0 - logic


if __name__ == "__main__":
    key = jax.random.PRNGKey(0)
    kf, kl, kp, kf2, kl2, kp2 = jax.random.split(key, 6)

    # --- Case 1: dim=32 (pads to 128 -> fused K=256 Linear1 path), f32 ------
    dim, batch = 32, 16
    feature = jax.random.normal(kf, (batch, dim), jnp.float32)
    logic = jax.random.uniform(kl, (batch, dim), jnp.float32)   # logic in [0, 1)
    w1, b1, w2, b2 = _init_params(kp, dim)
    params = prepare_entity_negation_params(w1, b1, w2, b2)     # one-time prep

    feat_out, logic_out = entity_negation(feature, logic, params)
    jax.block_until_ready((feat_out, logic_out))
    ref_feat, ref_logic = _reference(feature, logic, w1, b1, w2, b2)
    assert feat_out.shape == ref_feat.shape and logic_out.shape == ref_logic.shape
    assert jnp.allclose(feat_out, ref_feat, atol=1e-5, rtol=1e-5)
    assert jnp.allclose(logic_out, ref_logic, atol=1e-6, rtol=1e-6)

    # Padded-persist hot path: no per-call pad/slice, padding columns stay 0.
    dim_p = params[2].shape[0]
    fpad = jnp.pad(feature, ((0, 0), (0, dim_p - dim)))
    lpad = jnp.pad(logic, ((0, 0), (0, dim_p - dim)))
    fpo, lpo = entity_negation_padded(fpad, lpad, params, dim=dim)
    jax.block_until_ready((fpo, lpo))
    assert jnp.allclose(fpo[:, :dim], ref_feat, atol=1e-5, rtol=1e-5)
    assert jnp.allclose(lpo[:, :dim], ref_logic, atol=1e-6, rtol=1e-6)
    assert jnp.allclose(fpo[:, dim:], 0.0) and jnp.allclose(lpo[:, dim:], 0.0)

    # --- Case 2: bf16 storage (recommended deployment path) -----------------
    params_bf16 = prepare_entity_negation_params(w1, b1, w2, b2,
                                                 dtype=jnp.bfloat16)
    fbf, lbf = entity_negation(feature, logic, params_bf16)
    jax.block_until_ready((fbf, lbf))
    assert fbf.dtype == jnp.bfloat16 and lbf.dtype == jnp.bfloat16
    assert jnp.allclose(fbf.astype(jnp.float32), ref_feat, atol=5e-2, rtol=5e-2)
    assert jnp.allclose(lbf.astype(jnp.float32), ref_logic, atol=2e-2, rtol=2e-2)

    # --- Case 3: dim=256 (128-aligned, no padding -> split-K path), f32 -----
    dim2, batch2 = 256, 24
    feature2 = jax.random.normal(kf2, (batch2, dim2), jnp.float32)
    logic2 = jax.random.uniform(kl2, (batch2, dim2), jnp.float32)
    w1_2, b1_2, w2_2, b2_2 = _init_params(kp2, dim2)
    params2 = prepare_entity_negation_params(w1_2, b1_2, w2_2, b2_2)
    f2o, l2o = entity_negation(feature2, logic2, params2)
    jax.block_until_ready((f2o, l2o))
    rf2, rl2 = _reference(feature2, logic2, w1_2, b1_2, w2_2, b2_2)
    assert jnp.allclose(f2o, rf2, atol=1e-3, rtol=1e-3)
    assert jnp.allclose(l2o, rl2, atol=1e-6, rtol=1e-6)

    print("KERNEL_OK")
</pallas_src>

<mosaic_0001>
module attributes {stable_mosaic.version = 11 : i64} {
  func.func @_entity_negation_kernel(%arg0: i32, %arg1: memref<16x128xf32, #tpu.memory_space<vmem>>, %arg2: memref<16x128xf32, #tpu.memory_space<vmem>>, %arg3: memref<256x128xf32, #tpu.memory_space<vmem>>, %arg4: memref<1x128xf32, #tpu.memory_space<vmem>>, %arg5: memref<128x128xf32, #tpu.memory_space<vmem>>, %arg6: memref<1x128xf32, #tpu.memory_space<vmem>>, %arg7: memref<16x128xf32, #tpu.memory_space<vmem>>, %arg8: memref<16x128xf32, #tpu.memory_space<vmem>>) attributes {dimension_semantics = [#tpu.dimension_semantics<parallel>], iteration_bounds = array<i64: 1>, scalar_prefetch = 0 : i64, scratch_operands = 0 : i64, tpu.core_type = #tpu.core_type<tc>, window_params = [{transform_indices = @transform_0, window_bounds = array<i64: 16, 128>}, {transform_indices = @transform_1, window_bounds = array<i64: 16, 128>}, {pipeline_mode = #tpu.pipeline_mode<synchronous>, transform_indices = @transform_2, window_bounds = array<i64: 256, 128>}, {pipeline_mode = #tpu.pipeline_mode<synchronous>, transform_indices = @transform_3, window_bounds = array<i64: 1, 128>}, {pipeline_mode = #tpu.pipeline_mode<synchronous>, transform_indices = @transform_4, window_bounds = array<i64: 128, 128>}, {pipeline_mode = #tpu.pipeline_mode<synchronous>, transform_indices = @transform_5, window_bounds = array<i64: 1, 128>}, {transform_indices = @transform_6, window_bounds = array<i64: 16, 128>}, {transform_indices = @transform_7, window_bounds = array<i64: 16, 128>}]} {
    %c0 = arith.constant 0 : index
    %c0_0 = arith.constant 0 : index
    %0 = vector.load %arg1[%c0, %c0_0] : memref<16x128xf32, #tpu.memory_space<vmem>>, vector<16x128xf32>
    %c0_1 = arith.constant 0 : index
    %c0_2 = arith.constant 0 : index
    %1 = vector.load %arg2[%c0_1, %c0_2] : memref<16x128xf32, #tpu.memory_space<vmem>>, vector<16x128xf32>
    %2 = tpu.concatenate %0, %1 in 1 : vector<16x128xf32>, vector<16x128xf32> -> vector<16x256xf32>
    %c0_3 = arith.constant 0 : index
    %c0_4 = arith.constant 0 : index
    %3 = vector.load %arg3[%c0_3, %c0_4] : memref<256x128xf32, #tpu.memory_space<vmem>>, vector<256x128xf32>
    %cst = arith.constant dense<0.000000e+00> : vector<16x128xf32>
    %4 = tpu.matmul %2, %3, %cst {dimension_numbers = #tpu.dot_dimension_numbers<[1], [0], [0], [1], [0, 0, 1, 1], [], []>} : vector<16x256xf32>, vector<256x128xf32>, vector<16x128xf32> -> vector<16x128xf32>
    %c0_5 = arith.constant 0 : index
    %c0_6 = arith.constant 0 : index
    %5 = vector.load %arg4[%c0_5, %c0_6] : memref<1x128xf32, #tpu.memory_space<vmem>>, vector<1x128xf32>
    %6 = vector.broadcast %5 : vector<1x128xf32> to vector<16x128xf32>
    %7 = arith.addf %4, %6 : vector<16x128xf32>
    %cst_7 = arith.constant 0.000000e+00 : f32
    %8 = vector.broadcast %cst_7 : f32 to vector<16x128xf32>
    %9 = arith.maximumf %7, %8 : vector<16x128xf32>
    %c0_8 = arith.constant 0 : index
    %c0_9 = arith.constant 0 : index
    %10 = vector.load %arg5[%c0_8, %c0_9] : memref<128x128xf32, #tpu.memory_space<vmem>>, vector<128x128xf32>
    %cst_10 = arith.constant dense<0.000000e+00> : vector<16x128xf32>
    %11 = tpu.matmul %9, %10, %cst_10 {dimension_numbers = #tpu.dot_dimension_numbers<[1], [0], [0], [1], [0, 0, 1, 1], [], []>} : vector<16x128xf32>, vector<128x128xf32>, vector<16x128xf32> -> vector<16x128xf32>
    %c0_11 = arith.constant 0 : index
    %c0_12 = arith.constant 0 : index
    %12 = vector.load %arg6[%c0_11, %c0_12] : memref<1x128xf32, #tpu.memory_space<vmem>>, vector<1x128xf32>
    %13 = vector.broadcast %12 : vector<1x128xf32> to vector<16x128xf32>
    %14 = arith.addf %11, %13 : vector<16x128xf32>
    %c0_13 = arith.constant 0 : index
    %c0_14 = arith.constant 0 : index
    %15 = vector.load %arg7[%c0_13, %c0_14] : memref<16x128xf32, #tpu.memory_space<vmem>>, vector<16x128xf32>
    tpu.vector_store %arg7[%c0_13, %c0_14], %14 {strides = array<i32>} : memref<16x128xf32, #tpu.memory_space<vmem>>, vector<16x128xf32>,
    %cst_15 = arith.constant 1.000000e+00 : f32
    %16 = vector.broadcast %cst_15 : f32 to vector<16x128xf32>
    %17 = arith.subf %16, %1 : vector<16x128xf32>
    %18 = tpu.iota {dimensions = array<i32: 1>} : vector<16x128xi32>
    %c32_i32 = arith.constant 32 : i32
    %19 = vector.broadcast %c32_i32 : i32 to vector<16x128xi32>
    %20 = arith.cmpi slt, %18, %19 : vector<16x128xi32>
    %cst_16 = arith.constant 0.000000e+00 : f32
    %21 = vector.broadcast %cst_16 : f32 to vector<16x128xf32>
    %22 = arith.select %20, %17, %21 : vector<16x128xi1>, vector<16x128xf32>
    %c0_17 = arith.constant 0 : index
    %c0_18 = arith.constant 0 : index
    %23 = vector.load %arg8[%c0_17, %c0_18] : memref<16x128xf32, #tpu.memory_space<vmem>>, vector<16x128xf32>
    tpu.vector_store %arg8[%c0_17, %c0_18], %22 {strides = array<i32>} : memref<16x128xf32, #tpu.memory_space<vmem>>, vector<16x128xf32>,
    return
  }
  func.func @transform_0(%arg0: i32) -> (i32, i32) {
    %c0_i32 = arith.constant 0 : i32
    %c0_i32_0 = arith.constant 0 : i32
    return %arg0, %c0_i32 : i32, i32
  }
  func.func @transform_1(%arg0: i32) -> (i32, i32) {
    %c0_i32 = arith.constant 0 : i32
    %c0_i32_0 = arith.constant 0 : i32
    return %arg0, %c0_i32 : i32, i32
  }
  func.func @transform_2(%arg0: i32) -> (i32, i32) {
    %c0_i32 = arith.constant 0 : i32
    %c0_i32_0 = arith.constant 0 : i32
    %c0_i32_1 = arith.constant 0 : i32
    return %c0_i32, %c0_i32_0 : i32, i32
  }
  func.func @transform_3(%arg0: i32) -> (i32, i32) {
    %c0_i32 = arith.constant 0 : i32
    %c0_i32_0 = arith.constant 0 : i32
    %c0_i32_1 = arith.constant 0 : i32
    return %c0_i32, %c0_i32_0 : i32, i32
  }
  func.func @transform_4(%arg0: i32) -> (i32, i32) {
    %c0_i32 = arith.constant 0 : i32
    %c0_i32_0 = arith.constant 0 : i32
    %c0_i32_1 = arith.constant 0 : i32
    return %c0_i32, %c0_i32_0 : i32, i32
  }
  func.func @transform_5(%arg0: i32) -> (i32, i32) {
    %c0_i32 = arith.constant 0 : i32
    %c0_i32_0 = arith.constant 0 : i32
    %c0_i32_1 = arith.constant 0 : i32
    return %c0_i32, %c0_i32_0 : i32, i32
  }
  func.func @transform_6(%arg0: i32) -> (i32, i32) {
    %c0_i32 = arith.constant 0 : i32
    %c0_i32_0 = arith.constant 0 : i32
    return %arg0, %c0_i32 : i32, i32
  }
  func.func @transform_7(%arg0: i32) -> (i32, i32) {
    %c0_i32 = arith.constant 0 : i32
    %c0_i32_0 = arith.constant 0 : i32
    return %arg0, %c0_i32 : i32, i32
  }
}

</mosaic_0001>

<llo_original>
// kernel: entity_negation_padded.1
$region0: #{entity_negation_padded.1}
  #allocation0 [shape = 'u32[]', space=smem, size = 0x4, offset = 0x4, fixed_abs, tag = 'smem constant byte address 0x4 - core index']
  #allocation1 [shape = 'u32[144,128]{1,0:T(1,128)}', space=vmem, size = 0x12000, scoped, tag = 'internal scratch']
  %s0 = inlined_call_operand.hbm [shape: f32[16,128], index: 0, kind: input, shape index: {}]
  %s1 = inlined_call_operand.hbm [shape: f32[16,128], index: 1, kind: input, shape index: {}]
  %s2 = inlined_call_operand.hbm [shape: f32[256,128], index: 2, kind: input, shape index: {}]
  %s3 = inlined_call_operand.vmem [shape: f32[1,128], index: 3, kind: input, shape index: {}]
  %s4 = inlined_call_operand.hbm [shape: f32[128,128], index: 4, kind: input, shape index: {}]
  %s5 = inlined_call_operand.vmem [shape: f32[1,128], index: 5, kind: input, shape index: {}]
  %s6 = inlined_call_operand.hbm [shape: f32[16,128], index: 6, kind: output, shape index: {0}]
  %s7 = inlined_call_operand.hbm [shape: f32[16,128], index: 7, kind: output, shape index: {1}]
  %8 = xla_tuple %s6, %s7
  %s9 = sld [smem:[#allocation0]]
  $region58: #{entity_negation_padded.1} parent=0
    _
  %s11 = ssub.s32 1, %s9
  %s12 = scalar_select 0, %s11, %s9
  $region1: #{entity_negation_padded.1} parent=0
    #allocation2 [shape = 'u8[8192]{0}', space=vmem, size = 0x2000, scoped, tag = 'input window, operand 0, single buffered']
    #allocation3 [shape = 's32[1]{0}', space=sflag, size = 0x4, scoped, tag = 'scoped memory for entity_negation_padded.1']
    #allocation4 [shape = 's32[1]{0}', space=sflag, size = 0x4, scoped, tag = 'scoped memory for entity_negation_padded.1']
    #allocation5 [shape = 'u8[8192]{0}', space=vmem, size = 0x2000, scoped, tag = 'input window, operand 1, single buffered']
    #allocation6 [shape = 's32[1]{0}', space=sflag, size = 0x4, scoped, tag = 'scoped memory for entity_negation_padded.1']
    #allocation7 [shape = 'u8[131072]{0}', space=vmem, size = 0x20000, scoped, tag = 'input window, operand 2, single buffered']
    #allocation8 [shape = 'u8[65536]{0}', space=vmem, size = 0x10000, scoped, tag = 'input window, operand 4, single buffered']
    #allocation9 [shape = 's32[1]{0}', space=sflag, size = 0x4, scoped, tag = 'scoped memory for entity_negation_padded.1']
    #allocation10 [shape = 'u8[8192]{0}', space=vmem, size = 0x2000, scoped, tag = 'output window, operand 0, single buffered']
    #allocation11 [shape = 'u8[8192]{0}', space=vmem, size = 0x2000, scoped, tag = 'output window, operand 1, single buffered']
    #allocation12 [shape = 's32[1]{0}', space=sflag, size = 0x4, scoped, tag = 'scoped memory for entity_negation_padded.1']
    %13 = vsyncpa [#allocation3], 0
    %14 = vsyncpa [#allocation6], 0
    %15 = vsyncpa [#allocation9], 0
    %16 = vsyncpa [#allocation4], 0
    %17 = vsyncpa [#allocation12], 0
    // Predicated region
    $region2: #{entity_negation_padded.1} parent=1 // pred_check
      _
    $region3: #{entity_negation_padded.1} parent=1 // pred_check_branch
      %19 = sbr.rel (0) target = $region5
    $region4: #{entity_negation_padded.1} parent=1 // pred_region
      %s21 = ssub.s32 256, 256
      %22 = vsyncadd [#allocation3], %s21
      %s23 = sshll.u32 [#allocation2], 4
      %s24 = int_to_ptr.vmem [resolvable:$true] %s23
      %29 = dma.hbm_to_vmem [thread:$0]  %s0, 256, %s24, [#allocation3], 128, 128, 8
    $region5: #{entity_negation_padded.1} parent=1 // pred_fallthru
      _
    // Predicated region
    $region6: #{entity_negation_padded.1} parent=1 // pred_check
      _
    $region7: #{entity_negation_padded.1} parent=1 // pred_check_branch
      %31 = sbr.rel (0) target = $region9
    $region8: #{entity_negation_padded.1} parent=1 // pred_region
      %s33 = ssub.s32 256, 256
      %34 = vsyncadd [#allocation6], %s33
      %s35 = sshll.u32 [#allocation5], 4
      %s36 = int_to_ptr.vmem [resolvable:$true] %s35
      %41 = dma.hbm_to_vmem [thread:$0]  %s1, 256, %s36, [#allocation6], 128, 128, 8
    $region9: #{entity_negation_padded.1} parent=1 // pred_fallthru
      _
    // Predicated region
    $region10: #{entity_negation_padded.1} parent=1 // pred_check
      _
    $region11: #{entity_negation_padded.1} parent=1 // pred_check_branch
      %43 = sbr.rel (0) target = $region13
    $region12: #{entity_negation_padded.1} parent=1 // pred_region
      %s45 = ssub.s32 4096, 4096
      %46 = vsyncadd [#allocation6], %s45
      %s47 = sshll.u32 [#allocation7], 4
      %s48 = int_to_ptr.vmem [resolvable:$true] %s47
      %53 = dma.hbm_to_vmem [thread:$0]  %s2, 4096, %s48, [#allocation6], 128, 128, 8
    $region13: #{entity_negation_padded.1} parent=1 // pred_fallthru
      _
    // Predicated region
    $region14: #{entity_negation_padded.1} parent=1 // pred_check
      _
    $region15: #{entity_negation_padded.1} parent=1 // pred_check_branch
      %55 = sbr.rel (0) target = $region17
    $region16: #{entity_negation_padded.1} parent=1 // pred_region
      _
    $region17: #{entity_negation_padded.1} parent=1 // pred_fallthru
      _
    // Predicated region
    $region18: #{entity_negation_padded.1} parent=1 // pred_check
      _
    $region19: #{entity_negation_padded.1} parent=1 // pred_check_branch
      %57 = sbr.rel (0) target = $region21
    $region20: #{entity_negation_padded.1} parent=1 // pred_region
      %s59 = ssub.s32 2048, 2048
      %60 = vsyncadd [#allocation9], %s59
      %s61 = sshll.u32 [#allocation8], 4
      %s62 = int_to_ptr.vmem [resolvable:$true] %s61
      %67 = dma.hbm_to_vmem [thread:$0]  %s4, 2048, %s62, [#allocation9], 128, 128, 8
    $region21: #{entity_negation_padded.1} parent=1 // pred_fallthru
      _
    // Predicated region
    $region22: #{entity_negation_padded.1} parent=1 // pred_check
      _
    $region23: #{entity_negation_padded.1} parent=1 // pred_check_branch
      %69 = sbr.rel (0) target = $region25
    $region24: #{entity_negation_padded.1} parent=1 // pred_region
      _
    $region25: #{entity_negation_padded.1} parent=1 // pred_fallthru
      _
    // Predicated region
    $region26: #{entity_negation_padded.1} parent=1 // pred_check
      _
    $region27: #{entity_negation_padded.1} parent=1 // pred_check_branch
      %71 = sbr.rel (0) target = $region29
    $region28: #{entity_negation_padded.1} parent=1 // pred_region
      %72 = dma.done [#allocation3], 256
    $region29: #{entity_negation_padded.1} parent=1 // pred_fallthru
      _
    // Predicated region
    $region30: #{entity_negation_padded.1} parent=1 // pred_check
      _
    $region31: #{entity_negation_padded.1} parent=1 // pred_check_branch
      %74 = sbr.rel (0) target = $region33
    $region32: #{entity_negation_padded.1} parent=1 // pred_region
      %75 = dma.done [#allocation6], 256
    $region33: #{entity_negation_padded.1} parent=1 // pred_fallthru
      _
    // Predicated region
    $region34: #{entity_negation_padded.1} parent=1 // pred_check
      _
    $region35: #{entity_negation_padded.1} parent=1 // pred_check_branch
      %77 = sbr.rel (0) target = $region37
    $region36: #{entity_negation_padded.1} parent=1 // pred_region
      %78 = dma.done [#allocation6], 4096
    $region37: #{entity_negation_padded.1} parent=1 // pred_fallthru
      _
    // Predicated region
    $region38: #{entity_negation_padded.1} parent=1 // pred_check
      _
    $region39: #{entity_negation_padded.1} parent=1 // pred_check_branch
      %80 = sbr.rel (0) target = $region41
    $region40: #{entity_negation_padded.1} parent=1 // pred_region
      %81 = dma.done [#allocation9], 2048
    $region41: #{entity_negation_padded.1} parent=1 // pred_fallthru
      _
    %v82 = vld [vmem:[#allocation2] sm:$0xff]
    %v83 = vld [vmem:[#allocation2 + $0x8] sm:$0xff]
    %v84 = vld [vmem:[#allocation5] sm:$0xff]
    %v85 = vld [vmem:[#allocation5 + $0x8] sm:$0xff]
    %v86 = vld [vmem:[#allocation7] sm:$0xff]
    %v87 = vld [vmem:[#allocation7 + $0x8] sm:$0xff]
    %v88 = vld [vmem:[#allocation7 + $0x10] sm:$0xff]
    %v89 = vld [vmem:[#allocation7 + $0x18] sm:$0xff]
    %v90 = vld [vmem:[#allocation7 + $0x20] sm:$0xff]
    %v91 = vld [vmem:[#allocation7 + $0x28] sm:$0xff]
    %v92 = vld [vmem:[#allocation7 + $0x30] sm:$0xff]
    %v93 = vld [vmem:[#allocation7 + $0x38] sm:$0xff]
    %v94 = vld [vmem:[#allocation7 + $0x40] sm:$0xff]
    %v95 = vld [vmem:[#allocation7 + $0x48] sm:$0xff]
    %v96 = vld [vmem:[#allocation7 + $0x50] sm:$0xff]
    %v97 = vld [vmem:[#allocation7 + $0x58] sm:$0xff]
    %v98 = vld [vmem:[#allocation7 + $0x60] sm:$0xff]
    %v99 = vld [vmem:[#allocation7 + $0x68] sm:$0xff]
    %v100 = vld [vmem:[#allocation7 + $0x70] sm:$0xff]
    %v101 = vld [vmem:[#allocation7 + $0x78] sm:$0xff]
    %v102 = vld [vmem:[#allocation7 + $0x80] sm:$0xff]
    %v103 = vld [vmem:[#allocation7 + $0x88] sm:$0xff]
    %v104 = vld [vmem:[#allocation7 + $0x90] sm:$0xff]
    %v105 = vld [vmem:[#allocation7 + $0x98] sm:$0xff]
    %v106 = vld [vmem:[#allocation7 + $0xa0] sm:$0xff]
    %v107 = vld [vmem:[#allocation7 + $0xa8] sm:$0xff]
    %v108 = vld [vmem:[#allocation7 + $0xb0] sm:$0xff]
    %v109 = vld [vmem:[#allocation7 + $0xb8] sm:$0xff]
    %v110 = vld [vmem:[#allocation7 + $0xc0] sm:$0xff]
    %v111 = vld [vmem:[#allocation7 + $0xc8] sm:$0xff]
    %v112 = vld [vmem:[#allocation7 + $0xd0] sm:$0xff]
    %v113 = vld [vmem:[#allocation7 + $0xd8] sm:$0xff]
    %v114 = vld [vmem:[#allocation7 + $0xe0] sm:$0xff]
    %v115 = vld [vmem:[#allocation7 + $0xe8] sm:$0xff]
    %v116 = vld [vmem:[#allocation7 + $0xf0] sm:$0xff]
    %v117 = vld [vmem:[#allocation7 + $0xf8] sm:$0xff]
    %v118 = vld [vmem:[%s3] sm:$0x1]
    %v120 = vlaneseq
    %v121 = vshrl.u32 %v120, 7
    %v122 = vsub.s32 0, %v121
    %v123 = vrot.slane %v118, %v122
    %125 = vmatprep.subr.mxu0 0.0
    %126 = vmatpush1.msra.mxu0 %v86
    %127 = vmatprep.subr.mxu0 0.0
    %128 = vmatpush1.msra.mxu0 %v87
    %129 = vmatprep.subr.mxu0 0.0
    %130 = vmatpush1.msra.mxu0 %v88
    %131 = vmatprep.subr.mxu0 0.0
    %132 = vmatpush1.msra.mxu0 %v89
    %133 = vmatprep.subr.mxu0 0.0
    %134 = vmatpush1.msra.mxu0 %v90
    %135 = vmatprep.subr.mxu0 0.0
    %136 = vmatpush1.msra.mxu0 %v91
    %137 = vmatprep.subr.mxu0 0.0
    %138 = vmatpush1.msra.mxu0 %v92
    %139 = vmatprep.subr.mxu0 0.0
    %140 = vmatpush1.msra.mxu0 %v93
    %141 = vmatprep.subr.mxu0 0.0
    %142 = vmatpush1.msra.mxu0 %v94
    %143 = vmatprep.subr.mxu0 0.0
    %144 = vmatpush1.msra.mxu0 %v95
    %145 = vmatprep.subr.mxu0 0.0
    %146 = vmatpush1.msra.mxu0 %v96
    %147 = vmatprep.subr.mxu0 0.0
    %148 = vmatpush1.msra.mxu0 %v97
    %149 = vmatprep.subr.mxu0 0.0
    %150 = vmatpush1.msra.mxu0 %v98
    %151 = vmatprep.subr.mxu0 0.0
    %152 = vmatpush1.msra.mxu0 %v99
    %153 = vmatprep.subr.mxu0 0.0
    %154 = vmatpush1.msra.mxu0 %v100
    %155 = vmatprep.subr.mxu0 0.0
    %156 = vmatpush1.msra.mxu0 %v101
    %157 = vmatprep.subr.mxu0 0.0
    %158 = vmatpush1.msra.mxu0 %v102
    %159 = vmatprep.subr.mxu0 0.0
    %160 = vmatpush1.msra.mxu0 %v103
    %161 = vmatprep.subr.mxu0 0.0
    %162 = vmatpush1.msra.mxu0 %v104
    %163 = vmatprep.subr.mxu0 0.0
    %164 = vmatpush1.msra.mxu0 %v105
    %165 = vmatprep.subr.mxu0 0.0
    %166 = vmatpush1.msra.mxu0 %v106
    %167 = vmatprep.subr.mxu0 0.0
    %168 = vmatpush1.msra.mxu0 %v107
    %169 = vmatprep.subr.mxu0 0.0
    %170 = vmatpush1.msra.mxu0 %v108
    %171 = vmatprep.subr.mxu0 0.0
    %172 = vmatpush1.msra.mxu0 %v109
    %173 = vmatprep.subr.mxu0 0.0
    %174 = vmatpush1.msra.mxu0 %v110
    %175 = vmatprep.subr.mxu0 0.0
    %176 = vmatpush1.msra.mxu0 %v111
    %177 = vmatprep.subr.mxu0 0.0
    %178 = vmatpush1.msra.mxu0 %v112
    %179 = vmatprep.subr.mxu0 0.0
    %180 = vmatpush1.msra.mxu0 %v113
    %181 = vmatprep.subr.mxu0 0.0
    %182 = vmatpush1.msra.mxu0 %v114
    %183 = vmatprep.subr.mxu0 0.0
    %184 = vmatpush1.msra.mxu0 %v115
    %185 = vmatprep.subr.mxu0 0.0
    %186 = vmatpush1.msra.mxu0 %v116
    %187 = vmatprep.subr.mxu0 0.0
    %188 = vmatpush1.msra.mxu0 %v117
    %189 = vmatprep.mubr.f32.mxu0 %v84
    %190 = vmatmul.mubr.f32.gmra.mrb[0].mxu0 %v82
    %v191 = vpop.f32.mrb[0].mxu0
    %v192 = vadd.f32 %v123, %v191
    %v193 = vpop.f32.mrb[0].mxu0
    %194 = vmatprep.mubr.f32.mxu0 %v85
    %195 = vmatmul.mubr.f32.gmra.mrb[0].mxu0 %v83
    %v196 = vpop.f32.mrb[0].mxu0
    %v197 = vadd.f32 %v123, %v196
    %v198 = vpop.f32.mrb[0].mxu0
    %199 = vdwg.mxu0
    %v200 = vmax.f32 %v192, 0.0
    %v201 = vmax.f32 %v197, 0.0
    %v202 = vld [vmem:[#allocation8] sm:$0xff]
    %v203 = vld [vmem:[#allocation8 + $0x8] sm:$0xff]
    %v204 = vld [vmem:[#allocation8 + $0x10] sm:$0xff]
    %v205 = vld [vmem:[#allocation8 + $0x18] sm:$0xff]
    %v206 = vld [vmem:[#allocation8 + $0x20] sm:$0xff]
    %v207 = vld [vmem:[#allocation8 + $0x28] sm:$0xff]
    %v208 = vld [vmem:[#allocation8 + $0x30] sm:$0xff]
    %v209 = vld [vmem:[#allocation8 + $0x38] sm:$0xff]
    %v210 = vld [vmem:[#allocation8 + $0x40] sm:$0xff]
    %v211 = vld [vmem:[#allocation8 + $0x48] sm:$0xff]
    %v212 = vld [vmem:[#allocation8 + $0x50] sm:$0xff]
    %v213 = vld [vmem:[#allocation8 + $0x58] sm:$0xff]
    %v214 = vld [vmem:[#allocation8 + $0x60] sm:$0xff]
    %v215 = vld [vmem:[#allocation8 + $0x68] sm:$0xff]
    %v216 = vld [vmem:[#allocation8 + $0x70] sm:$0xff]
    %v217 = vld [vmem:[#allocation8 + $0x78] sm:$0xff]
    %v218 = vld [vmem:[%s5] sm:$0x1]
    %v220 = vlaneseq
    %v221 = vshrl.u32 %v220, 7
    %v222 = vsub.s32 0, %v221
    %v223 = vrot.slane %v218, %v222
    %225 = vmatprep.subr.mxu0 0.0
    %226 = vmatpush1.msra.mxu0 %v202
    %227 = vmatprep.subr.mxu0 0.0
    %228 = vmatpush1.msra.mxu0 %v203
    %229 = vmatprep.subr.mxu0 0.0
    %230 = vmatpush1.msra.mxu0 %v204
    %231 = vmatprep.subr.mxu0 0.0
    %232 = vmatpush1.msra.mxu0 %v205
    %233 = vmatprep.subr.mxu0 0.0
    %234 = vmatpush1.msra.mxu0 %v206
    %235 = vmatprep.subr.mxu0 0.0
    %236 = vmatpush1.msra.mxu0 %v207
    %237 = vmatprep.subr.mxu0 0.0
    %238 = vmatpush1.msra.mxu0 %v208
    %239 = vmatprep.subr.mxu0 0.0
    %240 = vmatpush1.msra.mxu0 %v209
    %241 = vmatprep.subr.mxu0 0.0
    %242 = vmatpush1.msra.mxu0 %v210
    %243 = vmatprep.subr.mxu0 0.0
    %244 = vmatpush1.msra.mxu0 %v211
    %245 = vmatprep.subr.mxu0 0.0
    %246 = vmatpush1.msra.mxu0 %v212
    %247 = vmatprep.subr.mxu0 0.0
    %248 = vmatpush1.msra.mxu0 %v213
    %249 = vmatprep.subr.mxu0 0.0
    %250 = vmatpush1.msra.mxu0 %v214
    %251 = vmatprep.subr.mxu0 0.0
    %252 = vmatpush1.msra.mxu0 %v215
    %253 = vmatprep.subr.mxu0 0.0
    %254 = vmatpush1.msra.mxu0 %v216
    %255 = vmatprep.subr.mxu0 0.0
    %256 = vmatpush1.msra.mxu0 %v217
    %257 = vmatprep.subr.mxu0 0.0
    %258 = vmatpush1.msra.mxu0 0.0
    %259 = vmatprep.subr.mxu0 0.0
    %260 = vmatpush1.msra.mxu0 0.0
    %261 = vmatprep.subr.mxu0 0.0
    %262 = vmatpush1.msra.mxu0 0.0
    %263 = vmatprep.subr.mxu0 0.0
    %264 = vmatpush1.msra.mxu0 0.0
    %265 = vmatprep.subr.mxu0 0.0
    %266 = vmatpush1.msra.mxu0 0.0
    %267 = vmatprep.subr.mxu0 0.0
    %268 = vmatpush1.msra.mxu0 0.0
    %269 = vmatprep.subr.mxu0 0.0
    %270 = vmatpush1.msra.mxu0 0.0
    %271 = vmatprep.subr.mxu0 0.0
    %272 = vmatpush1.msra.mxu0 0.0
    %273 = vmatprep.subr.mxu0 0.0
    %274 = vmatpush1.msra.mxu0 0.0
    %275 = vmatprep.subr.mxu0 0.0
    %276 = vmatpush1.msra.mxu0 0.0
    %277 = vmatprep.subr.mxu0 0.0
    %278 = vmatpush1.msra.mxu0 0.0
    %279 = vmatprep.subr.mxu0 0.0
    %280 = vmatpush1.msra.mxu0 0.0
    %281 = vmatprep.subr.mxu0 0.0
    %282 = vmatpush1.msra.mxu0 0.0
    %283 = vmatprep.subr.mxu0 0.0
    %284 = vmatpush1.msra.mxu0 0.0
    %285 = vmatprep.subr.mxu0 0.0
    %286 = vmatpush1.msra.mxu0 0.0
    %287 = vmatprep.subr.mxu0 0.0
    %288 = vmatpush1.msra.mxu0 0.0
    %289 = vmatprep.mubr.f32.mxu0 0.0
    %290 = vmatmul.mubr.f32.gmra.mrb[0].mxu0 %v200
    %v291 = vpop.f32.mrb[0].mxu0
    %v292 = vadd.f32 %v223, %v291
    %v293 = vpop.f32.mrb[0].mxu0
    %294 = vmatprep.mubr.f32.mxu0 0.0
    %295 = vmatmul.mubr.f32.gmra.mrb[0].mxu0 %v201
    %v296 = vpop.f32.mrb[0].mxu0
    %v297 = vadd.f32 %v223, %v296
    %v298 = vpop.f32.mrb[0].mxu0
    %299 = vdwg.mxu0
    %300 = vst [vmem:[#allocation10] sm:$0xff] %v292
    %301 = vst [vmem:[#allocation10 + $0x8] sm:$0xff] %v297
    %v302 = vsub.f32 1.0, %v84
    %v303 = vsub.f32 1.0, %v85
    %v304 = vlaneseq
    %v305 = vand.u32 %v304, 127
    %vm306 = vcmp.lt.s32.totalorder %v305, 32
    %v307 = vsel %vm306, %v302, 0.0
    %v308 = vsel %vm306, %v303, 0.0
    %309 = vst [vmem:[#allocation11] sm:$0xff] %v307
    %310 = vst [vmem:[#allocation11 + $0x8] sm:$0xff] %v308
    // Predicated region
    $region42: #{entity_negation_padded.1} parent=1 // pred_check
      _
    $region43: #{entity_negation_padded.1} parent=1 // pred_check_branch
      %312 = sbr.rel (0) target = $region45
    $region44: #{entity_negation_padded.1} parent=1 // pred_region
      %s314 = ssub.s32 256, 256
      %315 = vsyncadd [#allocation4], %s314
      %s316 = sshll.u32 [#allocation10], 4
      %s317 = int_to_ptr.vmem [resolvable:$true] %s316
      %322 = dma.vmem_to_hbm [thread:$0]  %s317, 256, %s6, [#allocation4], 128, 128, 8
    $region45: #{entity_negation_padded.1} parent=1 // pred_fallthru
      _
    // Predicated region
    $region46: #{entity_negation_padded.1} parent=1 // pred_check
      _
    $region47: #{entity_negation_padded.1} parent=1 // pred_check_branch
      %324 = sbr.rel (0) target = $region49
    $region48: #{entity_negation_padded.1} parent=1 // pred_region
      %s326 = ssub.s32 256, 256
      %327 = vsyncadd [#allocation12], %s326
      %s328 = sshll.u32 [#allocation11], 4
      %s329 = int_to_ptr.vmem [resolvable:$true] %s328
      %334 = dma.vmem_to_hbm [thread:$0]  %s329, 256, %s7, [#allocation12], 128, 128, 8
    $region49: #{entity_negation_padded.1} parent=1 // pred_fallthru
      _
    // Predicated region
    $region50: #{entity_negation_padded.1} parent=1 // pred_check
      _
    $region51: #{entity_negation_padded.1} parent=1 // pred_check_branch
      %336 = sbr.rel (0) target = $region53
    $region52: #{entity_negation_padded.1} parent=1 // pred_region
      %337 = dma.done [#allocation4], 256
    $region53: #{entity_negation_padded.1} parent=1 // pred_fallthru
      _
    // Predicated region
    $region54: #{entity_negation_padded.1} parent=1 // pred_check
      _
    $region55: #{entity_negation_padded.1} parent=1 // pred_check_branch
      %339 = sbr.rel (0) target = $region57
    $region56: #{entity_negation_padded.1} parent=1 // pred_region
      %340 = dma.done [#allocation12], 256
    $region57: #{entity_negation_padded.1} parent=1 // pred_fallthru
      _
    %341 = vsyncpa [#allocation3], 1
    %342 = vsyncpa [#allocation6], 1
    %343 = vsyncpa [#allocation9], 1
    %344 = vsyncpa [#allocation4], 1
    %345 = vsyncpa [#allocation12], 1

</llo_original>
